<compile_context>
chip_gen: v5e
topology: v5e:2x2
jax: 0.10.0
libtpu: 0.0.40
codegen_flags: <defaults>
</compile_context>

<pallas_src>
import functools
from typing import Tuple

import jax
import jax.numpy as jnp
from jax.experimental import pallas as pl
from jax.experimental.pallas import tpu as pltpu


DEFAULT_EPS = 1e-6     # rms_norm_eps (LLaMA variants often use 1e-5; configurable).
_NEG_INF = -1e30       # finite "-inf" used for masking inside kernels.


# ---------------------------------------------------------------------------
# helpers
# ---------------------------------------------------------------------------
def _tile(dim: int, target: int) -> int:
    """Full extent for small dims, `target` when it divides evenly."""
    if dim <= target:
        return dim
    return target if dim % target == 0 else dim


def _compiler_params(*semantics):
    return pltpu.CompilerParams(dimension_semantics=tuple(semantics))


# ---------------------------------------------------------------------------
# 1. Embedding: DMA row gather (ids scalar-prefetched into SMEM, table in HBM)
# ---------------------------------------------------------------------------
def _embed_gather_kernel(ids_ref, table_ref, o_ref, buf, sem):
    t = pl.program_id(0)
    rows = buf.shape[0]
    copies = []
    for r in range(rows):                        # static unroll: issue all DMAs...
        tok = ids_ref[t * rows + r]
        cp = pltpu.make_async_copy(table_ref.at[tok], buf.at[r], sem.at[r])
        cp.start()
        copies.append(cp)
    for cp in copies:                            # ...then wait on all of them.
        cp.wait()
    o_ref[...] = buf[...]


def embedding_gather(token_ids, table):
    """token_ids: (N,) int32 -> (N, H) gathered rows of `table` (pure DMA)."""
    n = token_ids.shape[0]
    h = table.shape[1]
    rows = 8                                     # sublane-aligned output tile
    npad = ((n + rows - 1) // rows) * rows
    ids = jnp.pad(token_ids.astype(jnp.int32), (0, npad - n))
    out = pl.pallas_call(
        _embed_gather_kernel,
        out_shape=jax.ShapeDtypeStruct((npad, h), table.dtype),
        grid_spec=pltpu.PrefetchScalarGridSpec(
            num_scalar_prefetch=1,
            grid=(npad // rows,),
            in_specs=[pl.BlockSpec(memory_space=pl.ANY)],
            out_specs=pl.BlockSpec((rows, h), lambda t, ids: (t, 0)),
            scratch_shapes=[pltpu.VMEM((rows, h), table.dtype),
                            pltpu.SemaphoreType.DMA((rows,))]),
        compiler_params=_compiler_params("arbitrary"),
    )(ids, table)
    return out[:n]


# ---------------------------------------------------------------------------
# 2. Fused RMSNorm + QKV projections (one pass over the activations)
# ---------------------------------------------------------------------------
def _norm_qkv_kernel(x_ref, w_ref, wq_ref, wk_ref, wv_ref,
                     q_ref, k_ref, v_ref, *, eps):
    x = x_ref[...].astype(jnp.float32)
    var = jnp.mean(x * x, axis=-1, keepdims=True)
    hn = ((x * jax.lax.rsqrt(var + eps)) * w_ref[...]).astype(jnp.bfloat16)
    q_ref[...] = jnp.dot(hn, wq_ref[...], preferred_element_type=jnp.float32)
    k_ref[...] = jnp.dot(hn, wk_ref[...], preferred_element_type=jnp.float32)
    v_ref[...] = jnp.dot(hn, wv_ref[...], preferred_element_type=jnp.float32)


def fused_norm_qkv(x, norm_w, wq, wk, wv, eps):
    m, h = x.shape
    tm = _tile(m, 128)
    row = pl.BlockSpec((tm, h), lambda i: (i, 0))
    full = lambda a: pl.BlockSpec(a.shape, lambda i: (0,) * a.ndim)
    out_sd = jax.ShapeDtypeStruct((m, wq.shape[1]), jnp.float32)
    return pl.pallas_call(
        functools.partial(_norm_qkv_kernel, eps=eps),
        out_shape=(out_sd, out_sd, out_sd),
        grid_spec=pltpu.PrefetchScalarGridSpec(
            num_scalar_prefetch=0,
            grid=(m // tm,),
            in_specs=[row, full(norm_w), full(wq), full(wk), full(wv)],
            out_specs=[pl.BlockSpec((tm, wq.shape[1]), lambda i: (i, 0))] * 3),
        compiler_params=_compiler_params("parallel"),
    )(x, norm_w, wq, wk, wv)


# ---------------------------------------------------------------------------
# 3. Flash attention: online softmax over kv tiles, RoPE + causal mask in-kernel
#    grid = (batch*heads, q_tiles, kv_tiles)  -- kv is the reduction axis (last)
# ---------------------------------------------------------------------------
def _flash_attn_kernel(q_ref, k_ref, v_ref, cq_ref, sq_ref, ck_ref, sk_ref,
                       mask_ref, o_ref, m_sc, l_sc, acc_sc):
    qi = pl.program_id(1)
    ki = pl.program_id(2)
    tq, d = q_ref.shape[1], q_ref.shape[2]
    tk = k_ref.shape[1]

    @pl.when(ki == 0)
    def _():
        m_sc[...] = jnp.full(m_sc.shape, -jnp.inf, m_sc.dtype)
        l_sc[...] = jnp.zeros(l_sc.shape, l_sc.dtype)
        acc_sc[...] = jnp.zeros(acc_sc.shape, acc_sc.dtype)

    def rope(x, cos, sin):
        # TODO(synk): at real head_dim (>=128) use pltpu.roll(x, d//2, -1) * sign so
        # the rotation rides the idle XLU slot; slice+concat kept here because the
        # demo head_dim (8) is below one lane tile.
        x1 = x[..., : d // 2]
        x2 = x[..., d // 2:]
        return x * cos + jnp.concatenate([-x2, x1], axis=-1) * sin

    q = rope(q_ref[...].astype(jnp.float32), cq_ref[...], sq_ref[...])
    k = rope(k_ref[...].astype(jnp.float32), ck_ref[...], sk_ref[...])

    s = jnp.einsum("bqd,bkd->bqk", q.astype(jnp.bfloat16), k.astype(jnp.bfloat16),
                   preferred_element_type=jnp.float32)
    s = s * (1.0 / jnp.sqrt(jnp.float32(d))) + mask_ref[...]

    # Causal mask built in-register from tile offsets (no (B*H,S,S) HBM traffic).
    # TODO(synk): seq_pos (input[3]) should offset these positions and the RoPE
    # tables for incremental decoding; positions start at 0 here.
    q_pos = qi * tq + jax.lax.broadcasted_iota(jnp.int32, (1, tq, tk), 1)
    k_pos = ki * tk + jax.lax.broadcasted_iota(jnp.int32, (1, tq, tk), 2)
    s = jnp.where(q_pos >= k_pos, s, _NEG_INF)

    m_prev = m_sc[...]
    m_new = jnp.maximum(m_prev, jnp.max(s, axis=-1, keepdims=True))
    alpha = jnp.exp(m_prev - m_new)
    p = jnp.exp(s - m_new)
    l_sc[...] = alpha * l_sc[...] + jnp.sum(p, axis=-1, keepdims=True)
    acc_sc[...] = alpha * acc_sc[...] + jnp.einsum(
        "bqk,bkd->bqd", p.astype(jnp.bfloat16), v_ref[...].astype(jnp.bfloat16),
        preferred_element_type=jnp.float32)
    m_sc[...] = m_new

    @pl.when(ki == pl.num_programs(2) - 1)
    def _():
        o_ref[...] = (acc_sc[...] *
                      pl.reciprocal(l_sc[...], approx=True)).astype(o_ref.dtype)


def flash_attention(q, k, v, cos, sin, pad_mask, n_heads):
    """q/k/v: (B*H, S, D); cos/sin: (1, S, D); pad_mask: (B, S, S) additive."""
    bh, s, d = q.shape
    tq = _tile(s, 128)
    tk = _tile(s, 128)
    q_spec = pl.BlockSpec((1, tq, d), lambda b, i, j: (b, i, 0))
    kv_spec = pl.BlockSpec((1, tk, d), lambda b, i, j: (b, j, 0))
    cq_spec = pl.BlockSpec((1, tq, d), lambda b, i, j: (0, i, 0))
    ck_spec = pl.BlockSpec((1, tk, d), lambda b, i, j: (0, j, 0))
    mask_spec = pl.BlockSpec((1, tq, tk), lambda b, i, j: (b // n_heads, i, j))
    return pl.pallas_call(
        _flash_attn_kernel,
        out_shape=jax.ShapeDtypeStruct((bh, s, d), jnp.float32),
        grid_spec=pltpu.PrefetchScalarGridSpec(
            num_scalar_prefetch=0,
            grid=(bh, s // tq, s // tk),
            in_specs=[q_spec, kv_spec, kv_spec, cq_spec, cq_spec, ck_spec, ck_spec,
                      mask_spec],
            out_specs=q_spec,
            scratch_shapes=[pltpu.VMEM((1, tq, 1), jnp.float32),
                            pltpu.VMEM((1, tq, 1), jnp.float32),
                            pltpu.VMEM((1, tq, d), jnp.float32)]),
        compiler_params=_compiler_params("parallel", "parallel", "arbitrary"),
    )(q, k, v, cos, sin, cos, sin, pad_mask)


# ---------------------------------------------------------------------------
# 4. Output projection + residual add (fused epilogue, avoids extra HBM pass)
# ---------------------------------------------------------------------------
def _proj_residual_kernel(a_ref, w_ref, res_ref, o_ref):
    y = jnp.dot(a_ref[...].astype(jnp.bfloat16), w_ref[...],
                preferred_element_type=jnp.float32)
    o_ref[...] = res_ref[...] + y


def fused_proj_residual(a, w, residual):
    m, kdim = a.shape
    n = w.shape[1]
    tm = _tile(m, 128)
    row_in = pl.BlockSpec((tm, kdim), lambda i: (i, 0))
    row_out = pl.BlockSpec((tm, n), lambda i: (i, 0))
    return pl.pallas_call(
        _proj_residual_kernel,
        out_shape=jax.ShapeDtypeStruct((m, n), jnp.float32),
        grid_spec=pltpu.PrefetchScalarGridSpec(
            num_scalar_prefetch=0,
            grid=(m // tm,),
            in_specs=[row_in, pl.BlockSpec(w.shape, lambda i: (0, 0)), row_out],
            out_specs=row_out),
        compiler_params=_compiler_params("parallel"),
    )(a, w, residual)


# ---------------------------------------------------------------------------
# 5. Fused RMSNorm + SiLU MLP + residual add
# ---------------------------------------------------------------------------
def _norm_mlp_residual_kernel(x_ref, w_ref, wg_ref, wu_ref, wd_ref, o_ref, *, eps):
    x = x_ref[...].astype(jnp.float32)
    var = jnp.mean(x * x, axis=-1, keepdims=True)
    hn = ((x * jax.lax.rsqrt(var + eps)) * w_ref[...]).astype(jnp.bfloat16)
    g = jnp.dot(hn, wg_ref[...], preferred_element_type=jnp.float32)
    u = jnp.dot(hn, wu_ref[...], preferred_element_type=jnp.float32)
    act = (g * jax.nn.sigmoid(g)) * u          # SiLU epilogue kept in f32 (v5e-safe)
    o_ref[...] = x + jnp.dot(act.astype(jnp.bfloat16), wd_ref[...],
                             preferred_element_type=jnp.float32)


def fused_norm_mlp_residual(x, norm_w, wg, wu, wd, eps):
    m, hdim = x.shape
    tm = _tile(m, 128)
    row = pl.BlockSpec((tm, hdim), lambda i: (i, 0))
    full = lambda a: pl.BlockSpec(a.shape, lambda i: (0,) * a.ndim)
    return pl.pallas_call(
        functools.partial(_norm_mlp_residual_kernel, eps=eps),
        out_shape=jax.ShapeDtypeStruct((m, hdim), jnp.float32),
        grid_spec=pltpu.PrefetchScalarGridSpec(
            num_scalar_prefetch=0,
            grid=(m // tm,),
            in_specs=[row, full(norm_w), full(wg), full(wu), full(wd)],
            out_specs=row),
        compiler_params=_compiler_params("parallel"),
    )(x, norm_w, wg, wu, wd)


# ---------------------------------------------------------------------------
# 6. Standalone RMSNorm (final norm layer), row-tiled
# ---------------------------------------------------------------------------
def _rmsnorm_kernel(x_ref, w_ref, o_ref, *, eps):
    x = x_ref[...].astype(jnp.float32)
    var = jnp.mean(x * x, axis=-1, keepdims=True)
    o_ref[...] = (x * jax.lax.rsqrt(var + eps)) * w_ref[...]


def rmsnorm(x, w, eps):
    m, hdim = x.shape
    tm = _tile(m, 128)
    row = pl.BlockSpec((tm, hdim), lambda i: (i, 0))
    return pl.pallas_call(
        functools.partial(_rmsnorm_kernel, eps=eps),
        out_shape=jax.ShapeDtypeStruct((m, hdim), jnp.float32),
        grid_spec=pltpu.PrefetchScalarGridSpec(
            num_scalar_prefetch=0,
            grid=(m // tm,),
            in_specs=[row, pl.BlockSpec((1, hdim), lambda i: (0, 0))],
            out_specs=row),
        compiler_params=_compiler_params("parallel"),
    )(x, w)


# ---------------------------------------------------------------------------
# 7. lm_head: K-reduction tiled matmul with f32 VMEM accumulator
# ---------------------------------------------------------------------------
def _lm_head_kernel(a_ref, b_ref, o_ref, acc_ref):
    @pl.when(pl.program_id(2) == 0)
    def _():
        acc_ref[...] = jnp.zeros(acc_ref.shape, acc_ref.dtype)

    acc_ref[...] += jnp.dot(a_ref[...].astype(jnp.bfloat16), b_ref[...],
                            preferred_element_type=jnp.float32)

    @pl.when(pl.program_id(2) == pl.num_programs(2) - 1)
    def _():
        o_ref[...] = acc_ref[...].astype(o_ref.dtype)


def lm_head_matmul(a, b):
    m, kdim = a.shape
    n = b.shape[1]
    tm = _tile(m, 128)
    tn = _tile(n, 256)      # lane-dense vocab tile (multiple of 128 at real sizes)
    tk = _tile(kdim, 512)
    return pl.pallas_call(
        _lm_head_kernel,
        out_shape=jax.ShapeDtypeStruct((m, n), jnp.float32),
        grid_spec=pltpu.PrefetchScalarGridSpec(
            num_scalar_prefetch=0,
            grid=(m // tm, n // tn, kdim // tk),
            in_specs=[pl.BlockSpec((tm, tk), lambda i, j, k: (i, k)),
                      pl.BlockSpec((tk, tn), lambda i, j, k: (k, j))],
            out_specs=pl.BlockSpec((tm, tn), lambda i, j, k: (i, j)),
            scratch_shapes=[pltpu.VMEM((tm, tn), jnp.float32)]),
        compiler_params=_compiler_params("parallel", "parallel", "arbitrary"),
    )(a, b)


# ---------------------------------------------------------------------------
# Wrapped modules (JAX analogues of the torch modules the wrapper dispatches on)
# ---------------------------------------------------------------------------
class Embedding:
    def __init__(self, table):
        self.table = table                                   # (vocab, H) f32

    def forward(self, tokens):                               # (B, S) int
        b, s = tokens.shape
        emb = embedding_gather(tokens.reshape(-1), self.table)
        return emb.reshape(b, s, self.table.shape[1]).astype(jnp.float32)


class RMSNormLayer:
    def __init__(self, weight, eps=DEFAULT_EPS):
        self.weight = weight.reshape(1, -1).astype(jnp.float32)
        self.eps = eps

    def forward(self, hidden):                               # (B, S, H)
        b, s, h = hidden.shape
        return rmsnorm(hidden.reshape(b * s, h), self.weight,
                       self.eps).reshape(b, s, h)


class OutputLayer:
    def __init__(self, weight):
        self.weight = weight.astype(jnp.bfloat16)            # (H, vocab) bf16 in HBM

    def forward(self, hidden):                               # (B, S, H)
        b, s, h = hidden.shape
        y = lm_head_matmul(hidden.reshape(b * s, h), self.weight)
        return y.reshape(b, s, self.weight.shape[1])


class Transformer:
    """One LLaMA decoder block, 4 fused Pallas kernels:
       RMSNorm+QKV -> flash attention (RoPE + causal in-kernel)
       -> Wo+residual -> RMSNorm+SiLU-MLP+residual."""

    def __init__(self, params):
        p = dict(params)
        for name in ("wq", "wk", "wv", "wo", "wg", "wu", "wd"):
            p[name] = p[name].astype(jnp.bfloat16)           # bf16 MXU inputs
        p["attn_norm"] = p["attn_norm"].reshape(1, -1).astype(jnp.float32)
        p["ffn_norm"] = p["ffn_norm"].reshape(1, -1).astype(jnp.float32)
        p.setdefault("eps", DEFAULT_EPS)
        self.p = p

    def forward(self, hidden, mask, rope, seq_pos):
        p = self.p
        b, s, h = hidden.shape
        nh, d = p["n_heads"], p["head_dim"]
        cos, sin = rope                                      # (1, S, D) each
        del seq_pos  # TODO(synk): offset RoPE / causal positions for decoding.

        x = hidden.reshape(b * s, h).astype(jnp.float32)
        q, k, v = fused_norm_qkv(x, p["attn_norm"], p["wq"], p["wk"], p["wv"],
                                 p["eps"])

        def split_heads(y):                                  # (M, H) -> (B*nh, S, D)
            return (y.reshape(b, s, nh, d).transpose(0, 2, 1, 3)
                     .reshape(b * nh, s, d))

        if mask is None:
            mask = jnp.zeros((b, s, s), jnp.float32)
        attn = flash_attention(split_heads(q), split_heads(k), split_heads(v),
                               cos, sin, mask, nh)           # (B*nh, S, D)
        attn = (attn.reshape(b, nh, s, d).transpose(0, 2, 1, 3)
                    .reshape(b * s, h))
        x = fused_proj_residual(attn, p["wo"], x)
        x = fused_norm_mlp_residual(x, p["ffn_norm"], p["wg"], p["wu"], p["wd"],
                                    p["eps"])
        return x.reshape(b, s, h)


# ---------------------------------------------------------------------------
# The wrapper under test — mirrors the torch forward exactly.
# ---------------------------------------------------------------------------
class LlamaSequentialWrapper:
    def __init__(self, module):
        self.wrapper_module_ = module

    def name(self) -> str:
        return type(self.wrapper_module_).__name__

    def forward(self, input: Tuple) -> Tuple:
        assert isinstance(input, tuple)
        assert len(input) == 5
        module_name = self.name()
        if module_name == "Embedding":
            output = self.wrapper_module_.forward(input[0])
            # input[-1] only toggles requires_grad_ in torch; forward values match.
            return (output,) + input[1:]
        elif module_name == "Transformer":
            # TODO(synk): CheckpointRecomputeFunction (gradient checkpointing) is a
            # backward-pass memory optimization; forward semantics are identical.
            output = self.wrapper_module_.forward(*input[:-1])
            return (output,) + input[1:]
        elif module_name == "RMSNormLayer" or module_name == "OutputLayer":
            output = self.wrapper_module_.forward(input[0])
            return (output,) + input[1:]
        else:
            raise RuntimeError(f"module invalid: {module_name}")


# ---------------------------------------------------------------------------
# Pure-JAX f32 reference of the same stack (for a numerics sanity check).
# ---------------------------------------------------------------------------
def _reference_forward(tokens, emb_table, p, final_norm_w, out_w,
                       cos, sin, pad_mask, eps):
    b, s = tokens.shape
    h = emb_table.shape[1]
    nh, d = p["n_heads"], p["head_dim"]

    def rms(v, w):
        var = jnp.mean(v * v, axis=-1, keepdims=True)
        return v * jax.lax.rsqrt(var + eps) * w

    x = emb_table[tokens].reshape(b * s, h)
    hn = rms(x, p["attn_norm"])

    def heads(y):
        return y.reshape(b, s, nh, d).transpose(0, 2, 1, 3)

    q, k, v = heads(hn @ p["wq"]), heads(hn @ p["wk"]), heads(hn @ p["wv"])

    def rope_apply(t):
        t1, t2 = t[..., : d // 2], t[..., d // 2:]
        return t * cos + jnp.concatenate([-t2, t1], axis=-1) * sin

    q, k = rope_apply(q), rope_apply(k)
    scores = jnp.einsum("bhqd,bhkd->bhqk", q, k) / jnp.sqrt(jnp.float32(d))
    scores = scores + pad_mask[:, None]
    causal = jnp.arange(s)[:, None] >= jnp.arange(s)[None, :]
    scores = jnp.where(causal, scores, _NEG_INF)
    probs = jax.nn.softmax(scores, axis=-1)
    attn = jnp.einsum("bhqk,bhkd->bhqd", probs, v)
    attn = attn.transpose(0, 2, 1, 3).reshape(b * s, h)
    x = x + attn @ p["wo"]
    hn2 = rms(x, p["ffn_norm"])
    g = hn2 @ p["wg"]
    u = hn2 @ p["wu"]
    x = x + ((g * jax.nn.sigmoid(g)) * u) @ p["wd"]
    x = rms(x, final_norm_w)
    return (x @ out_w).reshape(b, s, -1)


# ---------------------------------------------------------------------------
if __name__ == "__main__":
    B, S, H, N_HEADS, HEAD_DIM, VOCAB, INTER = 2, 8, 32, 4, 8, 64, 64

    key = jax.random.PRNGKey(0)
    keys = jax.random.split(key, 12)

    def init(k, shape, scale=0.05):
        return scale * jax.random.normal(k, shape, jnp.float32)

    emb_table = init(keys[0], (VOCAB, H))
    block_params = dict(
        n_heads=N_HEADS, head_dim=HEAD_DIM, eps=DEFAULT_EPS,
        attn_norm=jnp.ones((1, H), jnp.float32),
        ffn_norm=jnp.ones((1, H), jnp.float32),
        wq=init(keys[1], (H, H)), wk=init(keys[2], (H, H)),
        wv=init(keys[3], (H, H)), wo=init(keys[4], (H, H)),
        wg=init(keys[5], (H, INTER)), wu=init(keys[6], (H, INTER)),
        wd=init(keys[7], (INTER, H)),
    )
    final_norm_w = jnp.ones((1, H), jnp.float32)
    out_w = init(keys[8], (H, VOCAB))

    tokens = jax.random.randint(keys[9], (B, S), 0, VOCAB, dtype=jnp.int32)

    # RoPE tables, shape (1, S, D).
    pos = jnp.arange(S, dtype=jnp.float32)
    inv_freq = 1.0 / (10000.0 ** (jnp.arange(0, HEAD_DIM, 2,
                                             dtype=jnp.float32) / HEAD_DIM))
    freqs = jnp.einsum("s,d->sd", pos, inv_freq)
    ang = jnp.concatenate([freqs, freqs], axis=-1)
    cos = jnp.cos(ang).reshape(1, S, HEAD_DIM)
    sin = jnp.sin(ang).reshape(1, S, HEAD_DIM)

    # Additive padding mask (B, S, S): causal masking is generated in-kernel, so
    # this stays all-zero (and is O(B*S^2), not O(B*H*S^2), when actually used).
    pad_mask = jnp.zeros((B, S, S), jnp.float32)

    layers = [
        LlamaSequentialWrapper(Embedding(emb_table)),
        LlamaSequentialWrapper(Transformer(block_params)),
        LlamaSequentialWrapper(RMSNormLayer(final_norm_w)),
        LlamaSequentialWrapper(OutputLayer(out_w)),
    ]

    data: Tuple = (tokens, pad_mask, (cos, sin), jnp.arange(S), False)
    for layer in layers:
        data = layer.forward(data)

    logits = jax.block_until_ready(data[0])
    assert logits.shape == (B, S, VOCAB), logits.shape
    assert bool(jnp.all(jnp.isfinite(logits)))

    # Numerics check against a pure-JAX f32 reference (tolerance covers the bf16
    # MXU inputs and the approx reciprocal in the softmax epilogue).
    ref = _reference_forward(tokens, emb_table, block_params, final_norm_w,
                             out_w, cos, sin, pad_mask, DEFAULT_EPS)
    max_err = float(jnp.max(jnp.abs(logits - ref)))
    assert jnp.allclose(logits, ref, rtol=3e-2, atol=3e-2), max_err

    print("KERNEL_OK")
</pallas_src>

<mosaic_0001>
module attributes {stable_mosaic.version = 11 : i64} {
  func.func @_embed_gather_kernel(%arg0: i32, %arg1: memref<16xi32, #tpu.memory_space<smem>>, %arg2: memref<64x32xf32, #tpu.memory_space<any>>, %arg3: memref<8x32xf32, #tpu.memory_space<vmem>>, %arg4: memref<8x32xf32, #tpu.memory_space<vmem>>, %arg5: memref<8x!tpu.dma_semaphore, #tpu.memory_space<semaphore_mem>>) attributes {dimension_semantics = [#tpu.dimension_semantics<arbitrary>], iteration_bounds = array<i64: 2>, scalar_prefetch = 1 : i64, scratch_operands = 2 : i64, tpu.core_type = #tpu.core_type<tc>, window_params = [{}, {transform_indices = @transform_1, window_bounds = array<i64: 8, 32>}]} {
    %c8_i32 = arith.constant 8 : i32
    %0 = arith.muli %arg0, %c8_i32 : i32
    %c0_i32 = arith.constant 0 : i32
    %1 = arith.addi %0, %c0_i32 : i32
    %2 = arith.index_cast %1 : i32 to index
    %3 = memref.load %arg1[%2] : memref<16xi32, #tpu.memory_space<smem>>
    %c0_i32_0 = arith.constant 0 : i32
    %c0_i32_1 = arith.constant 0 : i32
    %c0_i32_2 = arith.constant 0 : i32
    %4 = tpu.memref_slice %arg2[%3, %c0_i32_2] : memref<64x32xf32, #tpu.memory_space<any>> -> memref<1x32xf32, #tpu.memory_space<any>>
    %5 = tpu.memref_squeeze %4 : memref<1x32xf32, #tpu.memory_space<any>> -> memref<32xf32, #tpu.memory_space<any>>
    %c0_i32_3 = arith.constant 0 : i32
    %6 = tpu.memref_slice %arg4[%c0_i32_0, %c0_i32_3] : memref<8x32xf32, #tpu.memory_space<vmem>> -> memref<1x32xf32, #tpu.memory_space<vmem>>
    %7 = tpu.memref_squeeze %6 : memref<1x32xf32, #tpu.memory_space<vmem>> -> memref<32xf32, #tpu.memory_space<vmem>>
    %8 = tpu.memref_slice %arg5[%c0_i32_1] : memref<8x!tpu.dma_semaphore, #tpu.memory_space<semaphore_mem>> -> memref<1x!tpu.dma_semaphore, #tpu.memory_space<semaphore_mem>>
    %9 = tpu.memref_squeeze %8 : memref<1x!tpu.dma_semaphore, #tpu.memory_space<semaphore_mem>> -> memref<!tpu.dma_semaphore, #tpu.memory_space<semaphore_mem>>
    tpu.enqueue_dma source(%5 : memref<32xf32, #tpu.memory_space<any>>) target(%7 : memref<32xf32, #tpu.memory_space<vmem>>) target_semaphore(%9 : memref<!tpu.dma_semaphore, #tpu.memory_space<semaphore_mem>>)
    %c8_i32_4 = arith.constant 8 : i32
    %10 = arith.muli %arg0, %c8_i32_4 : i32
    %c1_i32 = arith.constant 1 : i32
    %11 = arith.addi %10, %c1_i32 : i32
    %12 = arith.index_cast %11 : i32 to index
    %13 = memref.load %arg1[%12] : memref<16xi32, #tpu.memory_space<smem>>
    %c1_i32_5 = arith.constant 1 : i32
    %c1_i32_6 = arith.constant 1 : i32
    %c0_i32_7 = arith.constant 0 : i32
    %14 = tpu.memref_slice %arg2[%13, %c0_i32_7] : memref<64x32xf32, #tpu.memory_space<any>> -> memref<1x32xf32, #tpu.memory_space<any>>
    %15 = tpu.memref_squeeze %14 : memref<1x32xf32, #tpu.memory_space<any>> -> memref<32xf32, #tpu.memory_space<any>>
    %c0_i32_8 = arith.constant 0 : i32
    %16 = tpu.memref_slice %arg4[%c1_i32_5, %c0_i32_8] : memref<8x32xf32, #tpu.memory_space<vmem>> -> memref<1x32xf32, #tpu.memory_space<vmem>>
    %17 = tpu.memref_squeeze %16 : memref<1x32xf32, #tpu.memory_space<vmem>> -> memref<32xf32, #tpu.memory_space<vmem>>
    %18 = tpu.memref_slice %arg5[%c1_i32_6] : memref<8x!tpu.dma_semaphore, #tpu.memory_space<semaphore_mem>> -> memref<1x!tpu.dma_semaphore, #tpu.memory_space<semaphore_mem>>
    %19 = tpu.memref_squeeze %18 : memref<1x!tpu.dma_semaphore, #tpu.memory_space<semaphore_mem>> -> memref<!tpu.dma_semaphore, #tpu.memory_space<semaphore_mem>>
    tpu.enqueue_dma source(%15 : memref<32xf32, #tpu.memory_space<any>>) target(%17 : memref<32xf32, #tpu.memory_space<vmem>>) target_semaphore(%19 : memref<!tpu.dma_semaphore, #tpu.memory_space<semaphore_mem>>)
    %c8_i32_9 = arith.constant 8 : i32
    %20 = arith.muli %arg0, %c8_i32_9 : i32
    %c2_i32 = arith.constant 2 : i32
    %21 = arith.addi %20, %c2_i32 : i32
    %22 = arith.index_cast %21 : i32 to index
    %23 = memref.load %arg1[%22] : memref<16xi32, #tpu.memory_space<smem>>
    %c2_i32_10 = arith.constant 2 : i32
    %c2_i32_11 = arith.constant 2 : i32
    %c0_i32_12 = arith.constant 0 : i32
    %24 = tpu.memref_slice %arg2[%23, %c0_i32_12] : memref<64x32xf32, #tpu.memory_space<any>> -> memref<1x32xf32, #tpu.memory_space<any>>
    %25 = tpu.memref_squeeze %24 : memref<1x32xf32, #tpu.memory_space<any>> -> memref<32xf32, #tpu.memory_space<any>>
    %c0_i32_13 = arith.constant 0 : i32
    %26 = tpu.memref_slice %arg4[%c2_i32_10, %c0_i32_13] : memref<8x32xf32, #tpu.memory_space<vmem>> -> memref<1x32xf32, #tpu.memory_space<vmem>>
    %27 = tpu.memref_squeeze %26 : memref<1x32xf32, #tpu.memory_space<vmem>> -> memref<32xf32, #tpu.memory_space<vmem>>
    %28 = tpu.memref_slice %arg5[%c2_i32_11] : memref<8x!tpu.dma_semaphore, #tpu.memory_space<semaphore_mem>> -> memref<1x!tpu.dma_semaphore, #tpu.memory_space<semaphore_mem>>
    %29 = tpu.memref_squeeze %28 : memref<1x!tpu.dma_semaphore, #tpu.memory_space<semaphore_mem>> -> memref<!tpu.dma_semaphore, #tpu.memory_space<semaphore_mem>>
    tpu.enqueue_dma source(%25 : memref<32xf32, #tpu.memory_space<any>>) target(%27 : memref<32xf32, #tpu.memory_space<vmem>>) target_semaphore(%29 : memref<!tpu.dma_semaphore, #tpu.memory_space<semaphore_mem>>)
    %c8_i32_14 = arith.constant 8 : i32
    %30 = arith.muli %arg0, %c8_i32_14 : i32
    %c3_i32 = arith.constant 3 : i32
    %31 = arith.addi %30, %c3_i32 : i32
    %32 = arith.index_cast %31 : i32 to index
    %33 = memref.load %arg1[%32] : memref<16xi32, #tpu.memory_space<smem>>
    %c3_i32_15 = arith.constant 3 : i32
    %c3_i32_16 = arith.constant 3 : i32
    %c0_i32_17 = arith.constant 0 : i32
    %34 = tpu.memref_slice %arg2[%33, %c0_i32_17] : memref<64x32xf32, #tpu.memory_space<any>> -> memref<1x32xf32, #tpu.memory_space<any>>
    %35 = tpu.memref_squeeze %34 : memref<1x32xf32, #tpu.memory_space<any>> -> memref<32xf32, #tpu.memory_space<any>>
    %c0_i32_18 = arith.constant 0 : i32
    %36 = tpu.memref_slice %arg4[%c3_i32_15, %c0_i32_18] : memref<8x32xf32, #tpu.memory_space<vmem>> -> memref<1x32xf32, #tpu.memory_space<vmem>>
    %37 = tpu.memref_squeeze %36 : memref<1x32xf32, #tpu.memory_space<vmem>> -> memref<32xf32, #tpu.memory_space<vmem>>
    %38 = tpu.memref_slice %arg5[%c3_i32_16] : memref<8x!tpu.dma_semaphore, #tpu.memory_space<semaphore_mem>> -> memref<1x!tpu.dma_semaphore, #tpu.memory_space<semaphore_mem>>
    %39 = tpu.memref_squeeze %38 : memref<1x!tpu.dma_semaphore, #tpu.memory_space<semaphore_mem>> -> memref<!tpu.dma_semaphore, #tpu.memory_space<semaphore_mem>>
    tpu.enqueue_dma source(%35 : memref<32xf32, #tpu.memory_space<any>>) target(%37 : memref<32xf32, #tpu.memory_space<vmem>>) target_semaphore(%39 : memref<!tpu.dma_semaphore, #tpu.memory_space<semaphore_mem>>)
    %c8_i32_19 = arith.constant 8 : i32
    %40 = arith.muli %arg0, %c8_i32_19 : i32
    %c4_i32 = arith.constant 4 : i32
    %41 = arith.addi %40, %c4_i32 : i32
    %42 = arith.index_cast %41 : i32 to index
    %43 = memref.load %arg1[%42] : memref<16xi32, #tpu.memory_space<smem>>
    %c4_i32_20 = arith.constant 4 : i32
    %c4_i32_21 = arith.constant 4 : i32
    %c0_i32_22 = arith.constant 0 : i32
    %44 = tpu.memref_slice %arg2[%43, %c0_i32_22] : memref<64x32xf32, #tpu.memory_space<any>> -> memref<1x32xf32, #tpu.memory_space<any>>
    %45 = tpu.memref_squeeze %44 : memref<1x32xf32, #tpu.memory_space<any>> -> memref<32xf32, #tpu.memory_space<any>>
    %c0_i32_23 = arith.constant 0 : i32
    %46 = tpu.memref_slice %arg4[%c4_i32_20, %c0_i32_23] : memref<8x32xf32, #tpu.memory_space<vmem>> -> memref<1x32xf32, #tpu.memory_space<vmem>>
    %47 = tpu.memref_squeeze %46 : memref<1x32xf32, #tpu.memory_space<vmem>> -> memref<32xf32, #tpu.memory_space<vmem>>
    %48 = tpu.memref_slice %arg5[%c4_i32_21] : memref<8x!tpu.dma_semaphore, #tpu.memory_space<semaphore_mem>> -> memref<1x!tpu.dma_semaphore, #tpu.memory_space<semaphore_mem>>
    %49 = tpu.memref_squeeze %48 : memref<1x!tpu.dma_semaphore, #tpu.memory_space<semaphore_mem>> -> memref<!tpu.dma_semaphore, #tpu.memory_space<semaphore_mem>>
    tpu.enqueue_dma source(%45 : memref<32xf32, #tpu.memory_space<any>>) target(%47 : memref<32xf32, #tpu.memory_space<vmem>>) target_semaphore(%49 : memref<!tpu.dma_semaphore, #tpu.memory_space<semaphore_mem>>)
    %c8_i32_24 = arith.constant 8 : i32
    %50 = arith.muli %arg0, %c8_i32_24 : i32
    %c5_i32 = arith.constant 5 : i32
    %51 = arith.addi %50, %c5_i32 : i32
    %52 = arith.index_cast %51 : i32 to index
    %53 = memref.load %arg1[%52] : memref<16xi32, #tpu.memory_space<smem>>
    %c5_i32_25 = arith.constant 5 : i32
    %c5_i32_26 = arith.constant 5 : i32
    %c0_i32_27 = arith.constant 0 : i32
    %54 = tpu.memref_slice %arg2[%53, %c0_i32_27] : memref<64x32xf32, #tpu.memory_space<any>> -> memref<1x32xf32, #tpu.memory_space<any>>
    %55 = tpu.memref_squeeze %54 : memref<1x32xf32, #tpu.memory_space<any>> -> memref<32xf32, #tpu.memory_space<any>>
    %c0_i32_28 = arith.constant 0 : i32
    %56 = tpu.memref_slice %arg4[%c5_i32_25, %c0_i32_28] : memref<8x32xf32, #tpu.memory_space<vmem>> -> memref<1x32xf32, #tpu.memory_space<vmem>>
    %57 = tpu.memref_squeeze %56 : memref<1x32xf32, #tpu.memory_space<vmem>> -> memref<32xf32, #tpu.memory_space<vmem>>
    %58 = tpu.memref_slice %arg5[%c5_i32_26] : memref<8x!tpu.dma_semaphore, #tpu.memory_space<semaphore_mem>> -> memref<1x!tpu.dma_semaphore, #tpu.memory_space<semaphore_mem>>
    %59 = tpu.memref_squeeze %58 : memref<1x!tpu.dma_semaphore, #tpu.memory_space<semaphore_mem>> -> memref<!tpu.dma_semaphore, #tpu.memory_space<semaphore_mem>>
    tpu.enqueue_dma source(%55 : memref<32xf32, #tpu.memory_space<any>>) target(%57 : memref<32xf32, #tpu.memory_space<vmem>>) target_semaphore(%59 : memref<!tpu.dma_semaphore, #tpu.memory_space<semaphore_mem>>)
    %c8_i32_29 = arith.constant 8 : i32
    %60 = arith.muli %arg0, %c8_i32_29 : i32
    %c6_i32 = arith.constant 6 : i32
    %61 = arith.addi %60, %c6_i32 : i32
    %62 = arith.index_cast %61 : i32 to index
    %63 = memref.load %arg1[%62] : memref<16xi32, #tpu.memory_space<smem>>
    %c6_i32_30 = arith.constant 6 : i32
    %c6_i32_31 = arith.constant 6 : i32
    %c0_i32_32 = arith.constant 0 : i32
    %64 = tpu.memref_slice %arg2[%63, %c0_i32_32] : memref<64x32xf32, #tpu.memory_space<any>> -> memref<1x32xf32, #tpu.memory_space<any>>
    %65 = tpu.memref_squeeze %64 : memref<1x32xf32, #tpu.memory_space<any>> -> memref<32xf32, #tpu.memory_space<any>>
    %c0_i32_33 = arith.constant 0 : i32
    %66 = tpu.memref_slice %arg4[%c6_i32_30, %c0_i32_33] : memref<8x32xf32, #tpu.memory_space<vmem>> -> memref<1x32xf32, #tpu.memory_space<vmem>>
    %67 = tpu.memref_squeeze %66 : memref<1x32xf32, #tpu.memory_space<vmem>> -> memref<32xf32, #tpu.memory_space<vmem>>
    %68 = tpu.memref_slice %arg5[%c6_i32_31] : memref<8x!tpu.dma_semaphore, #tpu.memory_space<semaphore_mem>> -> memref<1x!tpu.dma_semaphore, #tpu.memory_space<semaphore_mem>>
    %69 = tpu.memref_squeeze %68 : memref<1x!tpu.dma_semaphore, #tpu.memory_space<semaphore_mem>> -> memref<!tpu.dma_semaphore, #tpu.memory_space<semaphore_mem>>
    tpu.enqueue_dma source(%65 : memref<32xf32, #tpu.memory_space<any>>) target(%67 : memref<32xf32, #tpu.memory_space<vmem>>) target_semaphore(%69 : memref<!tpu.dma_semaphore, #tpu.memory_space<semaphore_mem>>)
    %c8_i32_34 = arith.constant 8 : i32
    %70 = arith.muli %arg0, %c8_i32_34 : i32
    %c7_i32 = arith.constant 7 : i32
    %71 = arith.addi %70, %c7_i32 : i32
    %72 = arith.index_cast %71 : i32 to index
    %73 = memref.load %arg1[%72] : memref<16xi32, #tpu.memory_space<smem>>
    %c7_i32_35 = arith.constant 7 : i32
    %c7_i32_36 = arith.constant 7 : i32
    %c0_i32_37 = arith.constant 0 : i32
    %74 = tpu.memref_slice %arg2[%73, %c0_i32_37] : memref<64x32xf32, #tpu.memory_space<any>> -> memref<1x32xf32, #tpu.memory_space<any>>
    %75 = tpu.memref_squeeze %74 : memref<1x32xf32, #tpu.memory_space<any>> -> memref<32xf32, #tpu.memory_space<any>>
    %c0_i32_38 = arith.constant 0 : i32
    %76 = tpu.memref_slice %arg4[%c7_i32_35, %c0_i32_38] : memref<8x32xf32, #tpu.memory_space<vmem>> -> memref<1x32xf32, #tpu.memory_space<vmem>>
    %77 = tpu.memref_squeeze %76 : memref<1x32xf32, #tpu.memory_space<vmem>> -> memref<32xf32, #tpu.memory_space<vmem>>
    %78 = tpu.memref_slice %arg5[%c7_i32_36] : memref<8x!tpu.dma_semaphore, #tpu.memory_space<semaphore_mem>> -> memref<1x!tpu.dma_semaphore, #tpu.memory_space<semaphore_mem>>
    %79 = tpu.memref_squeeze %78 : memref<1x!tpu.dma_semaphore, #tpu.memory_space<semaphore_mem>> -> memref<!tpu.dma_semaphore, #tpu.memory_space<semaphore_mem>>
    tpu.enqueue_dma source(%75 : memref<32xf32, #tpu.memory_space<any>>) target(%77 : memref<32xf32, #tpu.memory_space<vmem>>) target_semaphore(%79 : memref<!tpu.dma_semaphore, #tpu.memory_space<semaphore_mem>>)
    %c0_i32_39 = arith.constant 0 : i32
    %c0_i32_40 = arith.constant 0 : i32
    %c0_i32_41 = arith.constant 0 : i32
    %80 = tpu.memref_slice %arg2[%3, %c0_i32_41] : memref<64x32xf32, #tpu.memory_space<any>> -> memref<1x32xf32, #tpu.memory_space<any>>
    %81 = tpu.memref_squeeze %80 : memref<1x32xf32, #tpu.memory_space<any>> -> memref<32xf32, #tpu.memory_space<any>>
    %c0_i32_42 = arith.constant 0 : i32
    %82 = tpu.memref_slice %arg4[%c0_i32_39, %c0_i32_42] : memref<8x32xf32, #tpu.memory_space<vmem>> -> memref<1x32xf32, #tpu.memory_space<vmem>>
    %83 = tpu.memref_squeeze %82 : memref<1x32xf32, #tpu.memory_space<vmem>> -> memref<32xf32, #tpu.memory_space<vmem>>
    %84 = tpu.memref_slice %arg5[%c0_i32_40] : memref<8x!tpu.dma_semaphore, #tpu.memory_space<semaphore_mem>> -> memref<1x!tpu.dma_semaphore, #tpu.memory_space<semaphore_mem>>
    %85 = tpu.memref_squeeze %84 : memref<1x!tpu.dma_semaphore, #tpu.memory_space<semaphore_mem>> -> memref<!tpu.dma_semaphore, #tpu.memory_space<semaphore_mem>>
    tpu.wait_dma2 semaphore(%85 : memref<!tpu.dma_semaphore, #tpu.memory_space<semaphore_mem>>) src(%81 : memref<32xf32, #tpu.memory_space<any>>) dst(%83 : memref<32xf32, #tpu.memory_space<vmem>>)
    %c1_i32_43 = arith.constant 1 : i32
    %c1_i32_44 = arith.constant 1 : i32
    %c0_i32_45 = arith.constant 0 : i32
    %86 = tpu.memref_slice %arg2[%13, %c0_i32_45] : memref<64x32xf32, #tpu.memory_space<any>> -> memref<1x32xf32, #tpu.memory_space<any>>
    %87 = tpu.memref_squeeze %86 : memref<1x32xf32, #tpu.memory_space<any>> -> memref<32xf32, #tpu.memory_space<any>>
    %c0_i32_46 = arith.constant 0 : i32
    %88 = tpu.memref_slice %arg4[%c1_i32_43, %c0_i32_46] : memref<8x32xf32, #tpu.memory_space<vmem>> -> memref<1x32xf32, #tpu.memory_space<vmem>>
    %89 = tpu.memref_squeeze %88 : memref<1x32xf32, #tpu.memory_space<vmem>> -> memref<32xf32, #tpu.memory_space<vmem>>
    %90 = tpu.memref_slice %arg5[%c1_i32_44] : memref<8x!tpu.dma_semaphore, #tpu.memory_space<semaphore_mem>> -> memref<1x!tpu.dma_semaphore, #tpu.memory_space<semaphore_mem>>
    %91 = tpu.memref_squeeze %90 : memref<1x!tpu.dma_semaphore, #tpu.memory_space<semaphore_mem>> -> memref<!tpu.dma_semaphore, #tpu.memory_space<semaphore_mem>>
    tpu.wait_dma2 semaphore(%91 : memref<!tpu.dma_semaphore, #tpu.memory_space<semaphore_mem>>) src(%87 : memref<32xf32, #tpu.memory_space<any>>) dst(%89 : memref<32xf32, #tpu.memory_space<vmem>>)
    %c2_i32_47 = arith.constant 2 : i32
    %c2_i32_48 = arith.constant 2 : i32
    %c0_i32_49 = arith.constant 0 : i32
    %92 = tpu.memref_slice %arg2[%23, %c0_i32_49] : memref<64x32xf32, #tpu.memory_space<any>> -> memref<1x32xf32, #tpu.memory_space<any>>
    %93 = tpu.memref_squeeze %92 : memref<1x32xf32, #tpu.memory_space<any>> -> memref<32xf32, #tpu.memory_space<any>>
    %c0_i32_50 = arith.constant 0 : i32
    %94 = tpu.memref_slice %arg4[%c2_i32_47, %c0_i32_50] : memref<8x32xf32, #tpu.memory_space<vmem>> -> memref<1x32xf32, #tpu.memory_space<vmem>>
    %95 = tpu.memref_squeeze %94 : memref<1x32xf32, #tpu.memory_space<vmem>> -> memref<32xf32, #tpu.memory_space<vmem>>
    %96 = tpu.memref_slice %arg5[%c2_i32_48] : memref<8x!tpu.dma_semaphore, #tpu.memory_space<semaphore_mem>> -> memref<1x!tpu.dma_semaphore, #tpu.memory_space<semaphore_mem>>
    %97 = tpu.memref_squeeze %96 : memref<1x!tpu.dma_semaphore, #tpu.memory_space<semaphore_mem>> -> memref<!tpu.dma_semaphore, #tpu.memory_space<semaphore_mem>>
    tpu.wait_dma2 semaphore(%97 : memref<!tpu.dma_semaphore, #tpu.memory_space<semaphore_mem>>) src(%93 : memref<32xf32, #tpu.memory_space<any>>) dst(%95 : memref<32xf32, #tpu.memory_space<vmem>>)
    %c3_i32_51 = arith.constant 3 : i32
    %c3_i32_52 = arith.constant 3 : i32
    %c0_i32_53 = arith.constant 0 : i32
    %98 = tpu.memref_slice %arg2[%33, %c0_i32_53] : memref<64x32xf32, #tpu.memory_space<any>> -> memref<1x32xf32, #tpu.memory_space<any>>
    %99 = tpu.memref_squeeze %98 : memref<1x32xf32, #tpu.memory_space<any>> -> memref<32xf32, #tpu.memory_space<any>>
    %c0_i32_54 = arith.constant 0 : i32
    %100 = tpu.memref_slice %arg4[%c3_i32_51, %c0_i32_54] : memref<8x32xf32, #tpu.memory_space<vmem>> -> memref<1x32xf32, #tpu.memory_space<vmem>>
    %101 = tpu.memref_squeeze %100 : memref<1x32xf32, #tpu.memory_space<vmem>> -> memref<32xf32, #tpu.memory_space<vmem>>
    %102 = tpu.memref_slice %arg5[%c3_i32_52] : memref<8x!tpu.dma_semaphore, #tpu.memory_space<semaphore_mem>> -> memref<1x!tpu.dma_semaphore, #tpu.memory_space<semaphore_mem>>
    %103 = tpu.memref_squeeze %102 : memref<1x!tpu.dma_semaphore, #tpu.memory_space<semaphore_mem>> -> memref<!tpu.dma_semaphore, #tpu.memory_space<semaphore_mem>>
    tpu.wait_dma2 semaphore(%103 : memref<!tpu.dma_semaphore, #tpu.memory_space<semaphore_mem>>) src(%99 : memref<32xf32, #tpu.memory_space<any>>) dst(%101 : memref<32xf32, #tpu.memory_space<vmem>>)
    %c4_i32_55 = arith.constant 4 : i32
    %c4_i32_56 = arith.constant 4 : i32
    %c0_i32_57 = arith.constant 0 : i32
    %104 = tpu.memref_slice %arg2[%43, %c0_i32_57] : memref<64x32xf32, #tpu.memory_space<any>> -> memref<1x32xf32, #tpu.memory_space<any>>
    %105 = tpu.memref_squeeze %104 : memref<1x32xf32, #tpu.memory_space<any>> -> memref<32xf32, #tpu.memory_space<any>>
    %c0_i32_58 = arith.constant 0 : i32
    %106 = tpu.memref_slice %arg4[%c4_i32_55, %c0_i32_58] : memref<8x32xf32, #tpu.memory_space<vmem>> -> memref<1x32xf32, #tpu.memory_space<vmem>>
    %107 = tpu.memref_squeeze %106 : memref<1x32xf32, #tpu.memory_space<vmem>> -> memref<32xf32, #tpu.memory_space<vmem>>
    %108 = tpu.memref_slice %arg5[%c4_i32_56] : memref<8x!tpu.dma_semaphore, #tpu.memory_space<semaphore_mem>> -> memref<1x!tpu.dma_semaphore, #tpu.memory_space<semaphore_mem>>
    %109 = tpu.memref_squeeze %108 : memref<1x!tpu.dma_semaphore, #tpu.memory_space<semaphore_mem>> -> memref<!tpu.dma_semaphore, #tpu.memory_space<semaphore_mem>>
    tpu.wait_dma2 semaphore(%109 : memref<!tpu.dma_semaphore, #tpu.memory_space<semaphore_mem>>) src(%105 : memref<32xf32, #tpu.memory_space<any>>) dst(%107 : memref<32xf32, #tpu.memory_space<vmem>>)
    %c5_i32_59 = arith.constant 5 : i32
    %c5_i32_60 = arith.constant 5 : i32
    %c0_i32_61 = arith.constant 0 : i32
    %110 = tpu.memref_slice %arg2[%53, %c0_i32_61] : memref<64x32xf32, #tpu.memory_space<any>> -> memref<1x32xf32, #tpu.memory_space<any>>
    %111 = tpu.memref_squeeze %110 : memref<1x32xf32, #tpu.memory_space<any>> -> memref<32xf32, #tpu.memory_space<any>>
    %c0_i32_62 = arith.constant 0 : i32
    %112 = tpu.memref_slice %arg4[%c5_i32_59, %c0_i32_62] : memref<8x32xf32, #tpu.memory_space<vmem>> -> memref<1x32xf32, #tpu.memory_space<vmem>>
    %113 = tpu.memref_squeeze %112 : memref<1x32xf32, #tpu.memory_space<vmem>> -> memref<32xf32, #tpu.memory_space<vmem>>
    %114 = tpu.memref_slice %arg5[%c5_i32_60] : memref<8x!tpu.dma_semaphore, #tpu.memory_space<semaphore_mem>> -> memref<1x!tpu.dma_semaphore, #tpu.memory_space<semaphore_mem>>
    %115 = tpu.memref_squeeze %114 : memref<1x!tpu.dma_semaphore, #tpu.memory_space<semaphore_mem>> -> memref<!tpu.dma_semaphore, #tpu.memory_space<semaphore_mem>>
    tpu.wait_dma2 semaphore(%115 : memref<!tpu.dma_semaphore, #tpu.memory_space<semaphore_mem>>) src(%111 : memref<32xf32, #tpu.memory_space<any>>) dst(%113 : memref<32xf32, #tpu.memory_space<vmem>>)
    %c6_i32_63 = arith.constant 6 : i32
    %c6_i32_64 = arith.constant 6 : i32
    %c0_i32_65 = arith.constant 0 : i32
    %116 = tpu.memref_slice %arg2[%63, %c0_i32_65] : memref<64x32xf32, #tpu.memory_space<any>> -> memref<1x32xf32, #tpu.memory_space<any>>
    %117 = tpu.memref_squeeze %116 : memref<1x32xf32, #tpu.memory_space<any>> -> memref<32xf32, #tpu.memory_space<any>>
    %c0_i32_66 = arith.constant 0 : i32
    %118 = tpu.memref_slice %arg4[%c6_i32_63, %c0_i32_66] : memref<8x32xf32, #tpu.memory_space<vmem>> -> memref<1x32xf32, #tpu.memory_space<vmem>>
    %119 = tpu.memref_squeeze %118 : memref<1x32xf32, #tpu.memory_space<vmem>> -> memref<32xf32, #tpu.memory_space<vmem>>
    %120 = tpu.memref_slice %arg5[%c6_i32_64] : memref<8x!tpu.dma_semaphore, #tpu.memory_space<semaphore_mem>> -> memref<1x!tpu.dma_semaphore, #tpu.memory_space<semaphore_mem>>
    %121 = tpu.memref_squeeze %120 : memref<1x!tpu.dma_semaphore, #tpu.memory_space<semaphore_mem>> -> memref<!tpu.dma_semaphore, #tpu.memory_space<semaphore_mem>>
    tpu.wait_dma2 semaphore(%121 : memref<!tpu.dma_semaphore, #tpu.memory_space<semaphore_mem>>) src(%117 : memref<32xf32, #tpu.memory_space<any>>) dst(%119 : memref<32xf32, #tpu.memory_space<vmem>>)
    %c7_i32_67 = arith.constant 7 : i32
    %c7_i32_68 = arith.constant 7 : i32
    %c0_i32_69 = arith.constant 0 : i32
    %122 = tpu.memref_slice %arg2[%73, %c0_i32_69] : memref<64x32xf32, #tpu.memory_space<any>> -> memref<1x32xf32, #tpu.memory_space<any>>
    %123 = tpu.memref_squeeze %122 : memref<1x32xf32, #tpu.memory_space<any>> -> memref<32xf32, #tpu.memory_space<any>>
    %c0_i32_70 = arith.constant 0 : i32
    %124 = tpu.memref_slice %arg4[%c7_i32_67, %c0_i32_70] : memref<8x32xf32, #tpu.memory_space<vmem>> -> memref<1x32xf32, #tpu.memory_space<vmem>>
    %125 = tpu.memref_squeeze %124 : memref<1x32xf32, #tpu.memory_space<vmem>> -> memref<32xf32, #tpu.memory_space<vmem>>
    %126 = tpu.memref_slice %arg5[%c7_i32_68] : memref<8x!tpu.dma_semaphore, #tpu.memory_space<semaphore_mem>> -> memref<1x!tpu.dma_semaphore, #tpu.memory_space<semaphore_mem>>
    %127 = tpu.memref_squeeze %126 : memref<1x!tpu.dma_semaphore, #tpu.memory_space<semaphore_mem>> -> memref<!tpu.dma_semaphore, #tpu.memory_space<semaphore_mem>>
    tpu.wait_dma2 semaphore(%127 : memref<!tpu.dma_semaphore, #tpu.memory_space<semaphore_mem>>) src(%123 : memref<32xf32, #tpu.memory_space<any>>) dst(%125 : memref<32xf32, #tpu.memory_space<vmem>>)
    %c0 = arith.constant 0 : index
    %c0_71 = arith.constant 0 : index
    %128 = vector.load %arg4[%c0, %c0_71] : memref<8x32xf32, #tpu.memory_space<vmem>>, vector<8x32xf32>
    %c0_72 = arith.constant 0 : index
    %c0_73 = arith.constant 0 : index
    %129 = vector.load %arg3[%c0_72, %c0_73] : memref<8x32xf32, #tpu.memory_space<vmem>>, vector<8x32xf32>
    tpu.vector_store %arg3[%c0_72, %c0_73], %128 {strides = array<i32>} : memref<8x32xf32, #tpu.memory_space<vmem>>, vector<8x32xf32>,
    return
  }
  func.func @transform_1(%arg0: i32, %arg1: memref<16xi32, #tpu.memory_space<smem>>) -> (i32, i32) {
    %c0_i32 = arith.constant 0 : i32
    %c0_i32_0 = arith.constant 0 : i32
    return %arg0, %c0_i32 : i32, i32
  }
}

</mosaic_0001>

<llo_original>
// kernel: tpu_custom_call.1
$region0: #{tpu_custom_call.1}
  #allocation0 [shape = 'u32[]', space=smem, size = 0x4, offset = 0x4, fixed_abs, tag = 'smem constant byte address 0x4 - core index']
  #allocation1 [shape = 'u32[72,128]{1,0:T(1,128)}', space=vmem, size = 0x9000, scoped, tag = 'internal scratch']
  #allocation2 [shape = 'f32[8,32]{1,0:T(8,128)}', space=vmem, size = 0x1000, scoped, tag = 'scratch operand']
  #allocation3 [shape = 's32[8]{0}', space=sflag, size = 0x20, scoped, tag = 'scratch operand']
  #allocation4 [shape = 's32[1]{0}', space=sflag, size = 0x4, scoped, tag = 'scoped memory for tpu_custom_call.1']
  #allocation5 [shape = 'u8[512]{0}', space=smem, size = 0x200, scoped, tag = 'prefetched SMEM operand 0']
  #allocation8 [shape = 's32[]', space=sflag, size = 0x4, offset = 0, fixed_abs, tag = 'sflag constant byte address 0x0 - dummy sync flag']
  #allocation9 [shape = 's32[]', space=sflag, size = 0x4, offset = 0, fixed_abs, tag = 'sflag constant byte address 0x0 - dummy sync flag']
  #allocation10 [shape = 's32[]', space=sflag, size = 0x4, offset = 0, fixed_abs, tag = 'sflag constant byte address 0x0 - dummy sync flag']
  #allocation11 [shape = 's32[]', space=sflag, size = 0x4, offset = 0, fixed_abs, tag = 'sflag constant byte address 0x0 - dummy sync flag']
  #allocation12 [shape = 's32[]', space=sflag, size = 0x4, offset = 0, fixed_abs, tag = 'sflag constant byte address 0x0 - dummy sync flag']
  #allocation13 [shape = 's32[]', space=sflag, size = 0x4, offset = 0, fixed_abs, tag = 'sflag constant byte address 0x0 - dummy sync flag']
  #allocation14 [shape = 's32[]', space=sflag, size = 0x4, offset = 0, fixed_abs, tag = 'sflag constant byte address 0x0 - dummy sync flag']
  #allocation15 [shape = 's32[]', space=sflag, size = 0x4, offset = 0, fixed_abs, tag = 'sflag constant byte address 0x0 - dummy sync flag']
  %s0 = inlined_call_operand.vmem [shape: s32[16], index: 0, kind: input, shape index: {}]
  %s1 = inlined_call_operand.vmem [shape: f32[64,32], index: 1, kind: input, shape index: {}]
  %s2 = inlined_call_operand.hbm [shape: f32[16,32], index: 2, kind: output, shape index: {}]
  %s3 = sld [smem:[#allocation0]]
  $region265: #{tpu_custom_call.1} parent=0
    _
  %s5 = ssub.s32 1, %s3
  %s6 = scalar_select 0, %s5, %s3
  %s8 = sshll.u32 %s0, 4
  %s9 = int_to_ptr.vmem [resolvable:$true] %s8
  %11 = dma.vmem_to_smem %s9, 16, [#allocation5], [#allocation4]
  %13 = dma.done [#allocation4], 16
  %14 = sfence
  $region1: #{tpu_custom_call.1} parent=0
    #allocation6 [shape = 'u8[8192]{0}', space=vmem, size = 0x2000, scoped, tag = 'output window, operand 0']
    #allocation7 [shape = 's32[2]{0}', space=sflag, size = 0x8, scoped, tag = 'scoped memory for tpu_custom_call.1']
    %15 = vsyncpa [#allocation7], 0
    %s16 = scalar_lea.sflag [#allocation7], 1
    %17 = vsyncpa %s16, 0
    loop: start=0, step=1, limit=3
    $region2: #{tpu_custom_call.1} parent=1 // loop_pre_header
      _
    $region3: #{tpu_custom_call.1} parent=1 // loop_header
      %s19 = sphi 0, %s23
      %p20 = scmp.ge.s32.totalorder %s19, 3
      %s28 = sphi 0, %s30
      %s31 = sphi 0, %s28
      %s41 = sphi 0, %s31
    $region4: #{tpu_custom_call.1} parent=1 // loop_header_branch
      %22 = sbr.rel (%p20) target = $region8
    $region5: #{tpu_custom_call.1} parent=1 // loop_body
      %s24 = ssub.s32 %s19, 1
      %s25 = sadd.s32 %s19, 1
      %s26 = ssub.s32 %s19, %s25
      %p27 = scmp.eq.s32.totalorder %s26, 0
      %s29 = sadd.s32 %s28, 1
      %s30 = scalar_select %p27, %s28, %s29
      %p32 = pneg %p27
      %p33 = scmp.eq.s32.totalorder %s19, 1
      %p34 = por %p32, %p33
      %p35 = scmp.ne.s32.totalorder %s28, %s31
      %p36 = scmp.eq.s32.totalorder %s19, 0
      %p37 = por %p35, %p36
      %p38 = scmp.ne.s32.totalorder %s28, %s31
      %p39 = scmp.eq.s32.totalorder %s24, 1
      %p40 = por %p38, %p39
      %p42 = scmp.ne.s32.totalorder %s31, %s41
      %p43 = scmp.eq.s32.totalorder %s24, 0
      %p44 = por %p42, %p43
      %p45 = scmp.lt.s32.totalorder %s19, 2
      // Predicated region
      $region9: #{tpu_custom_call.1} parent=5 // pred_check
        %p46 = pneg %p45
      $region10: #{tpu_custom_call.1} parent=5 // pred_check_branch
        %48 = sbr.rel (%p46) target = $region12
      $region11: #{tpu_custom_call.1} parent=5 // pred_region
        %p49 = pneg %p37
        %p50 = pneg %p34
        %s51 = sand.u32 %s28, 1
        %s52 = scalar_lea.sflag [#allocation7], %s51
        %s53 = sand.u32 %s28, 1
        %s54 = smul.addr %s53, 8
        %s55 = scalar_lea.vmem [#allocation6], %s54
        %s56 = smul.u32 %s19, 8
        %s57 = sld [smem:[#allocation5 + %s56]]
        %s58 = scalar_lea.vmem %s1, %s57
        // Predicated region
        $region13: #{tpu_custom_call.1} parent=11 // pred_check
          _
        $region14: #{tpu_custom_call.1} parent=11 // pred_check_branch
          %60 = sbr.rel target = $region16
        $region15: #{tpu_custom_call.1} parent=11 // pred_region
          // Predicated region
          $region28: #{tpu_custom_call.1} parent=15 // pred_check
            _
          $region29: #{tpu_custom_call.1} parent=15 // pred_check_branch
            %76 = sbr.rel (0) target = $region31
          $region30: #{tpu_custom_call.1} parent=15 // pred_region
            %s78 = ssub.s32 2, 1
            loop: start=0, step=1, limit=1
            $region32: #{tpu_custom_call.1} parent=30 // loop_pre_header
              _
            $region33: #{tpu_custom_call.1} parent=30 // loop_header
              %s80 = sphi 0, %s84
              %p81 = scmp.ge.s32.totalorder %s80, 1
              %s85 = sphi %s58, %s58
              %s86 = sphi [#allocation2], [#allocation2]
            $region34: #{tpu_custom_call.1} parent=30 // loop_header_branch
              %83 = sbr.rel (%p81) target = $region38
            $region35: #{tpu_custom_call.1} parent=30 // loop_body
              %v87 = vld [vmem:[%s85] sm:%s78]
              %88 = vst [vmem:[%s86] sm:%s78] %v87
            $region36: #{tpu_custom_call.1} parent=30 // loop_footer
              %s84 = sadd.s32 1, %s80
            $region37: #{tpu_custom_call.1} parent=30 // loop_footer_branch
              %79 = sbr.rel target = $region33
            $region38: #{tpu_custom_call.1} parent=30 // loop_exit
              _
          $region31: #{tpu_custom_call.1} parent=15 // pred_fallthru
            _
        $region16: #{tpu_custom_call.1} parent=11 // pred_fallthru
          _
        // Predicated region
        $region17: #{tpu_custom_call.1} parent=11 // pred_check
          _
        $region18: #{tpu_custom_call.1} parent=11 // pred_check_branch
          %62 = sbr.rel (0) target = $region20
        $region19: #{tpu_custom_call.1} parent=11 // pred_region
          %s64 = ssub.s32 2, 1
          loop: start=0, step=1, limit=1
          $region21: #{tpu_custom_call.1} parent=19 // loop_pre_header
            _
          $region22: #{tpu_custom_call.1} parent=19 // loop_header
            %s66 = sphi 0, %s70
            %p67 = scmp.ge.s32.totalorder %s66, 1
            %s71 = sphi %s58, %s58
            %s72 = sphi [#allocation2], [#allocation2]
          $region23: #{tpu_custom_call.1} parent=19 // loop_header_branch
            %69 = sbr.rel (%p67) target = $region27
          $region24: #{tpu_custom_call.1} parent=19 // loop_body
            %v73 = vld [vmem:[%s71] sm:%s64]
            %74 = vst [vmem:[%s72] sm:%s64] %v73
          $region25: #{tpu_custom_call.1} parent=19 // loop_footer
            %s70 = sadd.s32 1, %s66
          $region26: #{tpu_custom_call.1} parent=19 // loop_footer_branch
            %65 = sbr.rel target = $region22
          $region27: #{tpu_custom_call.1} parent=19 // loop_exit
            _
        $region20: #{tpu_custom_call.1} parent=11 // pred_fallthru
          _
        // Predicated region
        $region39: #{tpu_custom_call.1} parent=11 // pred_check
          _
        $region40: #{tpu_custom_call.1} parent=11 // pred_check_branch
          %91 = sbr.rel (0) target = $region42
        $region41: #{tpu_custom_call.1} parent=11 // pred_region
          %92 = vsyncadd [#allocation3], 16
        $region42: #{tpu_custom_call.1} parent=11 // pred_fallthru
          _
        %s93 = sadd.s32 %s56, 1
        %s94 = sld [smem:[#allocation5 + %s93]]
        %s95 = scalar_lea.vmem %s1, %s94
        %s96 = scalar_lea.vmem [#allocation2], 1
        %s97 = scalar_lea.sflag [#allocation3], 1
        // Predicated region
        $region43: #{tpu_custom_call.1} parent=11 // pred_check
          _
        $region44: #{tpu_custom_call.1} parent=11 // pred_check_branch
          %99 = sbr.rel target = $region46
        $region45: #{tpu_custom_call.1} parent=11 // pred_region
          // Predicated region
          $region58: #{tpu_custom_call.1} parent=45 // pred_check
            _
          $region59: #{tpu_custom_call.1} parent=45 // pred_check_branch
            %115 = sbr.rel (0) target = $region61
          $region60: #{tpu_custom_call.1} parent=45 // pred_region
            %s117 = ssub.s32 2, 1
            loop: start=0, step=1, limit=1
            $region62: #{tpu_custom_call.1} parent=60 // loop_pre_header
              _
            $region63: #{tpu_custom_call.1} parent=60 // loop_header
              %s119 = sphi 0, %s123
              %p120 = scmp.ge.s32.totalorder %s119, 1
              %s124 = sphi %s95, %s95
              %s125 = sphi %s96, %s96
            $region64: #{tpu_custom_call.1} parent=60 // loop_header_branch
              %122 = sbr.rel (%p120) target = $region68
            $region65: #{tpu_custom_call.1} parent=60 // loop_body
              %v126 = vld [vmem:[%s124] sm:%s117]
              %127 = vst [vmem:[%s125] sm:%s117] %v126
            $region66: #{tpu_custom_call.1} parent=60 // loop_footer
              %s123 = sadd.s32 1, %s119
            $region67: #{tpu_custom_call.1} parent=60 // loop_footer_branch
              %118 = sbr.rel target = $region63
            $region68: #{tpu_custom_call.1} parent=60 // loop_exit
              _
          $region61: #{tpu_custom_call.1} parent=45 // pred_fallthru
            _
        $region46: #{tpu_custom_call.1} parent=11 // pred_fallthru
          _
        // Predicated region
        $region47: #{tpu_custom_call.1} parent=11 // pred_check
          _
        $region48: #{tpu_custom_call.1} parent=11 // pred_check_branch
          %101 = sbr.rel (0) target = $region50
        $region49: #{tpu_custom_call.1} parent=11 // pred_region
          %s103 = ssub.s32 2, 1
          loop: start=0, step=1, limit=1
          $region51: #{tpu_custom_call.1} parent=49 // loop_pre_header
            _
          $region52: #{tpu_custom_call.1} parent=49 // loop_header
            %s105 = sphi 0, %s109
            %p106 = scmp.ge.s32.totalorder %s105, 1
            %s110 = sphi %s95, %s95
            %s111 = sphi %s96, %s96
          $region53: #{tpu_custom_call.1} parent=49 // loop_header_branch
            %108 = sbr.rel (%p106) target = $region57
          $region54: #{tpu_custom_call.1} parent=49 // loop_body
            %v112 = vld [vmem:[%s110] sm:%s103]
            %113 = vst [vmem:[%s111] sm:%s103] %v112
          $region55: #{tpu_custom_call.1} parent=49 // loop_footer
            %s109 = sadd.s32 1, %s105
          $region56: #{tpu_custom_call.1} parent=49 // loop_footer_branch
            %104 = sbr.rel target = $region52
          $region57: #{tpu_custom_call.1} parent=49 // loop_exit
            _
        $region50: #{tpu_custom_call.1} parent=11 // pred_fallthru
          _
        // Predicated region
        $region69: #{tpu_custom_call.1} parent=11 // pred_check
          _
        $region70: #{tpu_custom_call.1} parent=11 // pred_check_branch
          %130 = sbr.rel (0) target = $region72
        $region71: #{tpu_custom_call.1} parent=11 // pred_region
          %131 = vsyncadd %s97, 16
        $region72: #{tpu_custom_call.1} parent=11 // pred_fallthru
          _
        %s132 = sadd.s32 %s56, 2
        %s133 = sld [smem:[#allocation5 + %s132]]
        %s134 = scalar_lea.vmem %s1, %s133
        %s135 = scalar_lea.vmem [#allocation2], 2
        %s136 = scalar_lea.sflag [#allocation3], 2
        // Predicated region
        $region73: #{tpu_custom_call.1} parent=11 // pred_check
          _
        $region74: #{tpu_custom_call.1} parent=11 // pred_check_branch
          %138 = sbr.rel target = $region76
        $region75: #{tpu_custom_call.1} parent=11 // pred_region
          // Predicated region
          $region88: #{tpu_custom_call.1} parent=75 // pred_check
            _
          $region89: #{tpu_custom_call.1} parent=75 // pred_check_branch
            %154 = sbr.rel (0) target = $region91
          $region90: #{tpu_custom_call.1} parent=75 // pred_region
            %s156 = ssub.s32 2, 1
            loop: start=0, step=1, limit=1
            $region92: #{tpu_custom_call.1} parent=90 // loop_pre_header
              _
            $region93: #{tpu_custom_call.1} parent=90 // loop_header
              %s158 = sphi 0, %s162
              %p159 = scmp.ge.s32.totalorder %s158, 1
              %s163 = sphi %s134, %s134
              %s164 = sphi %s135, %s135
            $region94: #{tpu_custom_call.1} parent=90 // loop_header_branch
              %161 = sbr.rel (%p159) target = $region98
            $region95: #{tpu_custom_call.1} parent=90 // loop_body
              %v165 = vld [vmem:[%s163] sm:%s156]
              %166 = vst [vmem:[%s164] sm:%s156] %v165
            $region96: #{tpu_custom_call.1} parent=90 // loop_footer
              %s162 = sadd.s32 1, %s158
            $region97: #{tpu_custom_call.1} parent=90 // loop_footer_branch
              %157 = sbr.rel target = $region93
            $region98: #{tpu_custom_call.1} parent=90 // loop_exit
              _
          $region91: #{tpu_custom_call.1} parent=75 // pred_fallthru
            _
        $region76: #{tpu_custom_call.1} parent=11 // pred_fallthru
          _
        // Predicated region
        $region77: #{tpu_custom_call.1} parent=11 // pred_check
          _
        $region78: #{tpu_custom_call.1} parent=11 // pred_check_branch
          %140 = sbr.rel (0) target = $region80
        $region79: #{tpu_custom_call.1} parent=11 // pred_region
          %s142 = ssub.s32 2, 1
          loop: start=0, step=1, limit=1
          $region81: #{tpu_custom_call.1} parent=79 // loop_pre_header
            _
          $region82: #{tpu_custom_call.1} parent=79 // loop_header
            %s144 = sphi 0, %s148
            %p145 = scmp.ge.s32.totalorder %s144, 1
            %s149 = sphi %s134, %s134
            %s150 = sphi %s135, %s135
          $region83: #{tpu_custom_call.1} parent=79 // loop_header_branch
            %147 = sbr.rel (%p145) target = $region87
          $region84: #{tpu_custom_call.1} parent=79 // loop_body
            %v151 = vld [vmem:[%s149] sm:%s142]
            %152 = vst [vmem:[%s150] sm:%s142] %v151
          $region85: #{tpu_custom_call.1} parent=79 // loop_footer
            %s148 = sadd.s32 1, %s144
          $region86: #{tpu_custom_call.1} parent=79 // loop_footer_branch
            %143 = sbr.rel target = $region82
          $region87: #{tpu_custom_call.1} parent=79 // loop_exit
            _
        $region80: #{tpu_custom_call.1} parent=11 // pred_fallthru
          _
        // Predicated region
        $region99: #{tpu_custom_call.1} parent=11 // pred_check
          _
        $region100: #{tpu_custom_call.1} parent=11 // pred_check_branch
          %169 = sbr.rel (0) target = $region102
        $region101: #{tpu_custom_call.1} parent=11 // pred_region
          %170 = vsyncadd %s136, 16
        $region102: #{tpu_custom_call.1} parent=11 // pred_fallthru
          _
        %s171 = sadd.s32 %s56, 3
        %s172 = sld [smem:[#allocation5 + %s171]]
        %s173 = scalar_lea.vmem %s1, %s172
        %s174 = scalar_lea.vmem [#allocation2], 3
        %s175 = scalar_lea.sflag [#allocation3], 3
        // Predicated region
        $region103: #{tpu_custom_call.1} parent=11 // pred_check
          _
        $region104: #{tpu_custom_call.1} parent=11 // pred_check_branch
          %177 = sbr.rel target = $region106
        $region105: #{tpu_custom_call.1} parent=11 // pred_region
          // Predicated region
          $region118: #{tpu_custom_call.1} parent=105 // pred_check
            _
          $region119: #{tpu_custom_call.1} parent=105 // pred_check_branch
            %193 = sbr.rel (0) target = $region121
          $region120: #{tpu_custom_call.1} parent=105 // pred_region
            %s195 = ssub.s32 2, 1
            loop: start=0, step=1, limit=1
            $region122: #{tpu_custom_call.1} parent=120 // loop_pre_header
              _
            $region123: #{tpu_custom_call.1} parent=120 // loop_header
              %s197 = sphi 0, %s201
              %p198 = scmp.ge.s32.totalorder %s197, 1
              %s202 = sphi %s173, %s173
              %s203 = sphi %s174, %s174
            $region124: #{tpu_custom_call.1} parent=120 // loop_header_branch
              %200 = sbr.rel (%p198) target = $region128
            $region125: #{tpu_custom_call.1} parent=120 // loop_body
              %v204 = vld [vmem:[%s202] sm:%s195]
              %205 = vst [vmem:[%s203] sm:%s195] %v204
            $region126: #{tpu_custom_call.1} parent=120 // loop_footer
              %s201 = sadd.s32 1, %s197
            $region127: #{tpu_custom_call.1} parent=120 // loop_footer_branch
              %196 = sbr.rel target = $region123
            $region128: #{tpu_custom_call.1} parent=120 // loop_exit
              _
          $region121: #{tpu_custom_call.1} parent=105 // pred_fallthru
            _
        $region106: #{tpu_custom_call.1} parent=11 // pred_fallthru
          _
        // Predicated region
        $region107: #{tpu_custom_call.1} parent=11 // pred_check
          _
        $region108: #{tpu_custom_call.1} parent=11 // pred_check_branch
          %179 = sbr.rel (0) target = $region110
        $region109: #{tpu_custom_call.1} parent=11 // pred_region
          %s181 = ssub.s32 2, 1
          loop: start=0, step=1, limit=1
          $region111: #{tpu_custom_call.1} parent=109 // loop_pre_header
            _
          $region112: #{tpu_custom_call.1} parent=109 // loop_header
            %s183 = sphi 0, %s187
            %p184 = scmp.ge.s32.totalorder %s183, 1
            %s188 = sphi %s173, %s173
            %s189 = sphi %s174, %s174
          $region113: #{tpu_custom_call.1} parent=109 // loop_header_branch
            %186 = sbr.rel (%p184) target = $region117
          $region114: #{tpu_custom_call.1} parent=109 // loop_body
            %v190 = vld [vmem:[%s188] sm:%s181]
            %191 = vst [vmem:[%s189] sm:%s181] %v190
          $region115: #{tpu_custom_call.1} parent=109 // loop_footer
            %s187 = sadd.s32 1, %s183
          $region116: #{tpu_custom_call.1} parent=109 // loop_footer_branch
            %182 = sbr.rel target = $region112
          $region117: #{tpu_custom_call.1} parent=109 // loop_exit
            _
        $region110: #{tpu_custom_call.1} parent=11 // pred_fallthru
          _
        // Predicated region
        $region129: #{tpu_custom_call.1} parent=11 // pred_check
          _
        $region130: #{tpu_custom_call.1} parent=11 // pred_check_branch
          %208 = sbr.rel (0) target = $region132
        $region131: #{tpu_custom_call.1} parent=11 // pred_region
          %209 = vsyncadd %s175, 16
        $region132: #{tpu_custom_call.1} parent=11 // pred_fallthru
          _
        %s210 = sadd.s32 %s56, 4
        %s211 = sld [smem:[#allocation5 + %s210]]
        %s212 = scalar_lea.vmem %s1, %s211
        %s213 = scalar_lea.vmem [#allocation2], 4
        %s214 = scalar_lea.sflag [#allocation3], 4
        // Predicated region
        $region133: #{tpu_custom_call.1} parent=11 // pred_check
          _
        $region134: #{tpu_custom_call.1} parent=11 // pred_check_branch
          %216 = sbr.rel target = $region136
        $region135: #{tpu_custom_call.1} parent=11 // pred_region
          // Predicated region
          $region148: #{tpu_custom_call.1} parent=135 // pred_check
            _
          $region149: #{tpu_custom_call.1} parent=135 // pred_check_branch
            %232 = sbr.rel (0) target = $region151
          $region150: #{tpu_custom_call.1} parent=135 // pred_region
            %s234 = ssub.s32 2, 1
            loop: start=0, step=1, limit=1
            $region152: #{tpu_custom_call.1} parent=150 // loop_pre_header
              _
            $region153: #{tpu_custom_call.1} parent=150 // loop_header
              %s236 = sphi 0, %s240
              %p237 = scmp.ge.s32.totalorder %s236, 1
              %s241 = sphi %s212, %s212
              %s242 = sphi %s213, %s213
            $region154: #{tpu_custom_call.1} parent=150 // loop_header_branch
              %239 = sbr.rel (%p237) target = $region158
            $region155: #{tpu_custom_call.1} parent=150 // loop_body
              %v243 = vld [vmem:[%s241] sm:%s234]
              %244 = vst [vmem:[%s242] sm:%s234] %v243
            $region156: #{tpu_custom_call.1} parent=150 // loop_footer
              %s240 = sadd.s32 1, %s236
            $region157: #{tpu_custom_call.1} parent=150 // loop_footer_branch
              %235 = sbr.rel target = $region153
            $region158: #{tpu_custom_call.1} parent=150 // loop_exit
              _
          $region151: #{tpu_custom_call.1} parent=135 // pred_fallthru
            _
        $region136: #{tpu_custom_call.1} parent=11 // pred_fallthru
          _
        // Predicated region
        $region137: #{tpu_custom_call.1} parent=11 // pred_check
          _
        $region138: #{tpu_custom_call.1} parent=11 // pred_check_branch
          %218 = sbr.rel (0) target = $region140
        $region139: #{tpu_custom_call.1} parent=11 // pred_region
          %s220 = ssub.s32 2, 1
          loop: start=0, step=1, limit=1
          $region141: #{tpu_custom_call.1} parent=139 // loop_pre_header
            _
          $region142: #{tpu_custom_call.1} parent=139 // loop_header
            %s222 = sphi 0, %s226
            %p223 = scmp.ge.s32.totalorder %s222, 1
            %s227 = sphi %s212, %s212
            %s228 = sphi %s213, %s213
          $region143: #{tpu_custom_call.1} parent=139 // loop_header_branch
            %225 = sbr.rel (%p223) target = $region147
          $region144: #{tpu_custom_call.1} parent=139 // loop_body
            %v229 = vld [vmem:[%s227] sm:%s220]
            %230 = vst [vmem:[%s228] sm:%s220] %v229
          $region145: #{tpu_custom_call.1} parent=139 // loop_footer
            %s226 = sadd.s32 1, %s222
          $region146: #{tpu_custom_call.1} parent=139 // loop_footer_branch
            %221 = sbr.rel target = $region142
          $region147: #{tpu_custom_call.1} parent=139 // loop_exit
            _
        $region140: #{tpu_custom_call.1} parent=11 // pred_fallthru
          _
        // Predicated region
        $region159: #{tpu_custom_call.1} parent=11 // pred_check
          _
        $region160: #{tpu_custom_call.1} parent=11 // pred_check_branch
          %247 = sbr.rel (0) target = $region162
        $region161: #{tpu_custom_call.1} parent=11 // pred_region
          %248 = vsyncadd %s214, 16
        $region162: #{tpu_custom_call.1} parent=11 // pred_fallthru
          _
        %s249 = sadd.s32 %s56, 5
        %s250 = sld [smem:[#allocation5 + %s249]]
        %s251 = scalar_lea.vmem %s1, %s250
        %s252 = scalar_lea.vmem [#allocation2], 5
        %s253 = scalar_lea.sflag [#allocation3], 5
        // Predicated region
        $region163: #{tpu_custom_call.1} parent=11 // pred_check
          _
        $region164: #{tpu_custom_call.1} parent=11 // pred_check_branch
          %255 = sbr.rel target = $region166
        $region165: #{tpu_custom_call.1} parent=11 // pred_region
          // Predicated region
          $region178: #{tpu_custom_call.1} parent=165 // pred_check
            _
          $region179: #{tpu_custom_call.1} parent=165 // pred_check_branch
            %271 = sbr.rel (0) target = $region181
          $region180: #{tpu_custom_call.1} parent=165 // pred_region
            %s273 = ssub.s32 2, 1
            loop: start=0, step=1, limit=1
            $region182: #{tpu_custom_call.1} parent=180 // loop_pre_header
              _
            $region183: #{tpu_custom_call.1} parent=180 // loop_header
              %s275 = sphi 0, %s279
              %p276 = scmp.ge.s32.totalorder %s275, 1
              %s280 = sphi %s251, %s251
              %s281 = sphi %s252, %s252
            $region184: #{tpu_custom_call.1} parent=180 // loop_header_branch
              %278 = sbr.rel (%p276) target = $region188
            $region185: #{tpu_custom_call.1} parent=180 // loop_body
              %v282 = vld [vmem:[%s280] sm:%s273]
              %283 = vst [vmem:[%s281] sm:%s273] %v282
            $region186: #{tpu_custom_call.1} parent=180 // loop_footer
              %s279 = sadd.s32 1, %s275
            $region187: #{tpu_custom_call.1} parent=180 // loop_footer_branch
              %274 = sbr.rel target = $region183
            $region188: #{tpu_custom_call.1} parent=180 // loop_exit
              _
          $region181: #{tpu_custom_call.1} parent=165 // pred_fallthru
            _
        $region166: #{tpu_custom_call.1} parent=11 // pred_fallthru
          _
        // Predicated region
        $region167: #{tpu_custom_call.1} parent=11 // pred_check
          _
        $region168: #{tpu_custom_call.1} parent=11 // pred_check_branch
          %257 = sbr.rel (0) target = $region170
        $region169: #{tpu_custom_call.1} parent=11 // pred_region
          %s259 = ssub.s32 2, 1
          loop: start=0, step=1, limit=1
          $region171: #{tpu_custom_call.1} parent=169 // loop_pre_header
            _
          $region172: #{tpu_custom_call.1} parent=169 // loop_header
            %s261 = sphi 0, %s265
            %p262 = scmp.ge.s32.totalorder %s261, 1
            %s266 = sphi %s251, %s251
            %s267 = sphi %s252, %s252
          $region173: #{tpu_custom_call.1} parent=169 // loop_header_branch
            %264 = sbr.rel (%p262) target = $region177
          $region174: #{tpu_custom_call.1} parent=169 // loop_body
            %v268 = vld [vmem:[%s266] sm:%s259]
            %269 = vst [vmem:[%s267] sm:%s259] %v268
          $region175: #{tpu_custom_call.1} parent=169 // loop_footer
            %s265 = sadd.s32 1, %s261
          $region176: #{tpu_custom_call.1} parent=169 // loop_footer_branch
            %260 = sbr.rel target = $region172
          $region177: #{tpu_custom_call.1} parent=169 // loop_exit
            _
        $region170: #{tpu_custom_call.1} parent=11 // pred_fallthru
          _
        // Predicated region
        $region189: #{tpu_custom_call.1} parent=11 // pred_check
          _
        $region190: #{tpu_custom_call.1} parent=11 // pred_check_branch
          %286 = sbr.rel (0) target = $region192
        $region191: #{tpu_custom_call.1} parent=11 // pred_region
          %287 = vsyncadd %s253, 16
        $region192: #{tpu_custom_call.1} parent=11 // pred_fallthru
          _
        %s288 = sadd.s32 %s56, 6
        %s289 = sld [smem:[#allocation5 + %s288]]
        %s290 = scalar_lea.vmem %s1, %s289
        %s291 = scalar_lea.vmem [#allocation2], 6
        %s292 = scalar_lea.sflag [#allocation3], 6
        // Predicated region
        $region193: #{tpu_custom_call.1} parent=11 // pred_check
          _
        $region194: #{tpu_custom_call.1} parent=11 // pred_check_branch
          %294 = sbr.rel target = $region196
        $region195: #{tpu_custom_call.1} parent=11 // pred_region
          // Predicated region
          $region208: #{tpu_custom_call.1} parent=195 // pred_check
            _
          $region209: #{tpu_custom_call.1} parent=195 // pred_check_branch
            %310 = sbr.rel (0) target = $region211
          $region210: #{tpu_custom_call.1} parent=195 // pred_region
            %s312 = ssub.s32 2, 1
            loop: start=0, step=1, limit=1
            $region212: #{tpu_custom_call.1} parent=210 // loop_pre_header
              _
            $region213: #{tpu_custom_call.1} parent=210 // loop_header
              %s314 = sphi 0, %s318
              %p315 = scmp.ge.s32.totalorder %s314, 1
              %s319 = sphi %s290, %s290
              %s320 = sphi %s291, %s291
            $region214: #{tpu_custom_call.1} parent=210 // loop_header_branch
              %317 = sbr.rel (%p315) target = $region218
            $region215: #{tpu_custom_call.1} parent=210 // loop_body
              %v321 = vld [vmem:[%s319] sm:%s312]
              %322 = vst [vmem:[%s320] sm:%s312] %v321
            $region216: #{tpu_custom_call.1} parent=210 // loop_footer
              %s318 = sadd.s32 1, %s314
            $region217: #{tpu_custom_call.1} parent=210 // loop_footer_branch
              %313 = sbr.rel target = $region213
            $region218: #{tpu_custom_call.1} parent=210 // loop_exit
              _
          $region211: #{tpu_custom_call.1} parent=195 // pred_fallthru
            _
        $region196: #{tpu_custom_call.1} parent=11 // pred_fallthru
          _
        // Predicated region
        $region197: #{tpu_custom_call.1} parent=11 // pred_check
          _
        $region198: #{tpu_custom_call.1} parent=11 // pred_check_branch
          %296 = sbr.rel (0) target = $region200
        $region199: #{tpu_custom_call.1} parent=11 // pred_region
          %s298 = ssub.s32 2, 1
          loop: start=0, step=1, limit=1
          $region201: #{tpu_custom_call.1} parent=199 // loop_pre_header
            _
          $region202: #{tpu_custom_call.1} parent=199 // loop_header
            %s300 = sphi 0, %s304
            %p301 = scmp.ge.s32.totalorder %s300, 1
            %s305 = sphi %s290, %s290
            %s306 = sphi %s291, %s291
          $region203: #{tpu_custom_call.1} parent=199 // loop_header_branch
            %303 = sbr.rel (%p301) target = $region207
          $region204: #{tpu_custom_call.1} parent=199 // loop_body
            %v307 = vld [vmem:[%s305] sm:%s298]
            %308 = vst [vmem:[%s306] sm:%s298] %v307
          $region205: #{tpu_custom_call.1} parent=199 // loop_footer
            %s304 = sadd.s32 1, %s300
          $region206: #{tpu_custom_call.1} parent=199 // loop_footer_branch
            %299 = sbr.rel target = $region202
          $region207: #{tpu_custom_call.1} parent=199 // loop_exit
            _
        $region200: #{tpu_custom_call.1} parent=11 // pred_fallthru
          _
        // Predicated region
        $region219: #{tpu_custom_call.1} parent=11 // pred_check
          _
        $region220: #{tpu_custom_call.1} parent=11 // pred_check_branch
          %325 = sbr.rel (0) target = $region222
        $region221: #{tpu_custom_call.1} parent=11 // pred_region
          %326 = vsyncadd %s292, 16
        $region222: #{tpu_custom_call.1} parent=11 // pred_fallthru
          _
        %s327 = sadd.s32 %s56, 7
        %s328 = sld [smem:[#allocation5 + %s327]]
        %s329 = scalar_lea.vmem %s1, %s328
        %s330 = scalar_lea.vmem [#allocation2], 7
        %s331 = scalar_lea.sflag [#allocation3], 7
        // Predicated region
        $region223: #{tpu_custom_call.1} parent=11 // pred_check
          _
        $region224: #{tpu_custom_call.1} parent=11 // pred_check_branch
          %333 = sbr.rel target = $region226
        $region225: #{tpu_custom_call.1} parent=11 // pred_region
          // Predicated region
          $region238: #{tpu_custom_call.1} parent=225 // pred_check
            _
          $region239: #{tpu_custom_call.1} parent=225 // pred_check_branch
            %349 = sbr.rel (0) target = $region241
          $region240: #{tpu_custom_call.1} parent=225 // pred_region
            %s351 = ssub.s32 2, 1
            loop: start=0, step=1, limit=1
            $region242: #{tpu_custom_call.1} parent=240 // loop_pre_header
              _
            $region243: #{tpu_custom_call.1} parent=240 // loop_header
              %s353 = sphi 0, %s357
              %p354 = scmp.ge.s32.totalorder %s353, 1
              %s358 = sphi %s329, %s329
              %s359 = sphi %s330, %s330
            $region244: #{tpu_custom_call.1} parent=240 // loop_header_branch
              %356 = sbr.rel (%p354) target = $region248
            $region245: #{tpu_custom_call.1} parent=240 // loop_body
              %v360 = vld [vmem:[%s358] sm:%s351]
              %361 = vst [vmem:[%s359] sm:%s351] %v360
            $region246: #{tpu_custom_call.1} parent=240 // loop_footer
              %s357 = sadd.s32 1, %s353
            $region247: #{tpu_custom_call.1} parent=240 // loop_footer_branch
              %352 = sbr.rel target = $region243
            $region248: #{tpu_custom_call.1} parent=240 // loop_exit
              _
          $region241: #{tpu_custom_call.1} parent=225 // pred_fallthru
            _
        $region226: #{tpu_custom_call.1} parent=11 // pred_fallthru
          _
        // Predicated region
        $region227: #{tpu_custom_call.1} parent=11 // pred_check
          _
        $region228: #{tpu_custom_call.1} parent=11 // pred_check_branch
          %335 = sbr.rel (0) target = $region230
        $region229: #{tpu_custom_call.1} parent=11 // pred_region
          %s337 = ssub.s32 2, 1
          loop: start=0, step=1, limit=1
          $region231: #{tpu_custom_call.1} parent=229 // loop_pre_header
            _
          $region232: #{tpu_custom_call.1} parent=229 // loop_header
            %s339 = sphi 0, %s343
            %p340 = scmp.ge.s32.totalorder %s339, 1
            %s344 = sphi %s329, %s329
            %s345 = sphi %s330, %s330
          $region233: #{tpu_custom_call.1} parent=229 // loop_header_branch
            %342 = sbr.rel (%p340) target = $region237
          $region234: #{tpu_custom_call.1} parent=229 // loop_body
            %v346 = vld [vmem:[%s344] sm:%s337]
            %347 = vst [vmem:[%s345] sm:%s337] %v346
          $region235: #{tpu_custom_call.1} parent=229 // loop_footer
            %s343 = sadd.s32 1, %s339
          $region236: #{tpu_custom_call.1} parent=229 // loop_footer_branch
            %338 = sbr.rel target = $region232
          $region237: #{tpu_custom_call.1} parent=229 // loop_exit
            _
        $region230: #{tpu_custom_call.1} parent=11 // pred_fallthru
          _
        // Predicated region
        $region249: #{tpu_custom_call.1} parent=11 // pred_check
          _
        $region250: #{tpu_custom_call.1} parent=11 // pred_check_branch
          %364 = sbr.rel (0) target = $region252
        $region251: #{tpu_custom_call.1} parent=11 // pred_region
          %365 = vsyncadd %s331, 16
        $region252: #{tpu_custom_call.1} parent=11 // pred_fallthru
          _
        %367 = dma.done [#allocation3], 16
        %369 = dma.done %s97, 16
        %371 = dma.done %s136, 16
        %373 = dma.done %s175, 16
        %375 = dma.done %s214, 16
        %377 = dma.done %s253, 16
        %379 = dma.done %s292, 16
        %381 = dma.done %s331, 16
        %v382 = vld [vmem:[#allocation2] sm:$0xff]
        %vm383 = vcmask 261120
        %384 = vst.msk [vmem:[%s55] sm:$0xff] %vm383, %v382
        %s385 = sand.u32 %s28, 1
        %s386 = scalar_lea.sflag [#allocation7], %s385
        %s387 = sand.u32 %s28, 1
        %s388 = smul.addr %s387, 8
        %s389 = scalar_lea.vmem [#allocation6], %s388
        // Predicated region
        $region253: #{tpu_custom_call.1} parent=11 // pred_check
          %p390 = pneg %p34
        $region254: #{tpu_custom_call.1} parent=11 // pred_check_branch
          %392 = sbr.rel (%p390) target = $region256
        $region255: #{tpu_custom_call.1} parent=11 // pred_region
          %394 = vsyncadd %s386, 0
          %s395 = smul.addr %s19, 8
          %s396 = scalar_lea.hbm %s2, %s395
          %s398 = sshll.u32 %s389, 4
          %s399 = int_to_ptr.vmem [resolvable:$true] %s398
          %s400 = sshll.u32 %s396, 4
          %s401 = int_to_ptr.hbm [resolvable:$true] %s400
          %403 = dma.vmem_to_hbm [thread:$0]  %s399, 128, %s401, %s386
        $region256: #{tpu_custom_call.1} parent=11 // pred_fallthru
          _
      $region12: #{tpu_custom_call.1} parent=5 // pred_fallthru
        _
      %p404 = scmp.le.s32.totalorder 1, %s19
      // Predicated region
      $region257: #{tpu_custom_call.1} parent=5 // pred_check
        %p405 = pneg %p404
      $region258: #{tpu_custom_call.1} parent=5 // pred_check_branch
        %407 = sbr.rel (%p405) target = $region260
      $region259: #{tpu_custom_call.1} parent=5 // pred_region
        %s408 = ssub.s32 %s19, 1
        // Predicated region
        $region261: #{tpu_custom_call.1} parent=259 // pred_check
          %p409 = pneg %p40
        $region262: #{tpu_custom_call.1} parent=259 // pred_check_branch
          %411 = sbr.rel (%p409) target = $region264
        $region263: #{tpu_custom_call.1} parent=259 // pred_region
          %s412 = sand.u32 %s31, 1
          %s413 = scalar_lea.sflag [#allocation7], %s412
          %s414 = sand.u32 %s31, 1
          %s415 = smul.addr %s414, 8
          %s416 = scalar_lea.vmem [#allocation6], %s415
          %418 = dma.done %s413, 128
        $region264: #{tpu_custom_call.1} parent=259 // pred_fallthru
          _
      $region260: #{tpu_custom_call.1} parent=5 // pred_fallthru
        _
    $region6: #{tpu_custom_call.1} parent=1 // loop_footer
      %s23 = sadd.s32 1, %s19
    $region7: #{tpu_custom_call.1} parent=1 // loop_footer_branch
      %18 = sbr.rel target = $region3
    $region8: #{tpu_custom_call.1} parent=1 // loop_exit
      _
    %419 = vsyncpa [#allocation7], 1
    %s420 = scalar_lea.sflag [#allocation7], 1
    %421 = vsyncpa %s420, 1
  %422 = vsyncmov [#allocation3]
  %s423 = vpop.sfrf %422
  %p424 = scmp.eq.s32.totalorder %s423, 0
  %p425 = pneg %p424
  %427 = shalt.err (%p425)
  %s428 = scalar_lea.sflag [#allocation3], 1
  %429 = vsyncmov %s428
  %s430 = vpop.sfrf %429
  %p431 = scmp.eq.s32.totalorder %s430, 0
  %p432 = pneg %p431
  %434 = shalt.err (%p432)
  %s435 = scalar_lea.sflag [#allocation3], 2
  %436 = vsyncmov %s435
  %s437 = vpop.sfrf %436
  %p438 = scmp.eq.s32.totalorder %s437, 0
  %p439 = pneg %p438
  %441 = shalt.err (%p439)
  %s442 = scalar_lea.sflag [#allocation3], 3
  %443 = vsyncmov %s442
  %s444 = vpop.sfrf %443
  %p445 = scmp.eq.s32.totalorder %s444, 0
  %p446 = pneg %p445
  %448 = shalt.err (%p446)
  %s449 = scalar_lea.sflag [#allocation3], 4
  %450 = vsyncmov %s449
  %s451 = vpop.sfrf %450
  %p452 = scmp.eq.s32.totalorder %s451, 0
  %p453 = pneg %p452
  %455 = shalt.err (%p453)
  %s456 = scalar_lea.sflag [#allocation3], 5
  %457 = vsyncmov %s456
  %s458 = vpop.sfrf %457
  %p459 = scmp.eq.s32.totalorder %s458, 0
  %p460 = pneg %p459
  %462 = shalt.err (%p460)
  %s463 = scalar_lea.sflag [#allocation3], 6
  %464 = vsyncmov %s463
  %s465 = vpop.sfrf %464
  %p466 = scmp.eq.s32.totalorder %s465, 0
  %p467 = pneg %p466
  %469 = shalt.err (%p467)
  %s470 = scalar_lea.sflag [#allocation3], 7
  %471 = vsyncmov %s470
  %s472 = vpop.sfrf %471
  %p473 = scmp.eq.s32.totalorder %s472, 0
  %p474 = pneg %p473
  %476 = shalt.err (%p474)

</llo_original>
